<compile_context>
chip_gen: v6e
topology: v6e:2x2x1
jax: 0.10.0
libtpu: 0.0.40
codegen_flags: <defaults>
</compile_context>

<pallas_src>
import functools

import numpy as np
import jax
import jax.numpy as jnp
from jax.experimental import pallas as pl
from jax.experimental.pallas import tpu as pltpu


# ---------------------------------------------------------------------------
# Hardware / tiling helpers
# ---------------------------------------------------------------------------

_MAX_TS = 65536  # hard cap on spatial elements per grid step (codegen sanity)


def _vmem_capacity_bytes():
    """Generation-aware VMEM capacity (v5e/v6e: 128 MiB, v7x: 64 MiB per core)."""
    try:
        info = pltpu.get_tpu_info()
        cap = getattr(info, "vmem_capacity_bytes", None)
        if cap:
            return int(cap)
    except Exception:
        pass
    return 64 * 1024 * 1024  # conservative default = v7x per-core VMEM


def _round_down(x, m):
    return max(m, (x // m) * m)


def _round_up(x, m):
    return ((x + m - 1) // m) * m


def _pick_bn(n, s, bytes_per_spatial, budget, spatial_is_full):
    """Batch elements per grid step (only >1 when the spatial tile is full-extent)."""
    if not spatial_is_full or n <= 1:
        return 1
    want = max(1, 16384 // max(s, 1))                       # ~16K spatial positions / step
    cap = max(1, budget // max(1, bytes_per_spatial * s))   # VMEM cap (double-buffered)
    bn = min(n, want, cap, max(1, n // 2))                  # keep >=2 grid steps (v7x megacore)
    while n % bn:                                           # even splits only -> no partial batch blocks
        bn -= 1
    return bn


# ---------------------------------------------------------------------------
# Kernels
# ---------------------------------------------------------------------------

def _sigmoid(acc):
    # sigmoid(a) = 1/(1 + exp(-a)). exp and the approximate reciprocal both run on
    # the EUP slot (keeps the VALU free; matters most on v5e); one Newton step
    # restores ~f32 precision. Clamp so exp() cannot overflow to inf (which would
    # make the Newton step produce NaN).
    z = jnp.exp(-jnp.maximum(acc, -30.0))   # sigmoid(-30) ~ 1e-13 ~ 0
    d = 1.0 + z
    r = pl.reciprocal(d, approx=True)
    return r * (2.0 - d * r)


def _conv_sigmoid_kernel(x_ref, w_ref, b_ref, o_ref, *, use_mxu):
    """Generic path. x_ref: (bn, C_in, ts); w_ref: (C_out, C_in); b_ref: (C_out, 1);
    o_ref: (bn, C_out, ts). Spatial stays on the lane axis."""
    w = w_ref[...]
    b = b_ref[...].astype(jnp.float32)
    bn, c_in = x_ref.shape[0], x_ref.shape[1]
    for bi in range(bn):
        x = x_ref[bi]
        if use_mxu:
            # MXU consumes bf16 natively (wrapper matched weight dtype to x), f32 acc.
            acc = jnp.dot(w, x, preferred_element_type=jnp.float32)
        else:
            # Tiny channel counts: unrolled VPU broadcast-FMA chain (f32).
            xf = x.astype(jnp.float32)
            wf = w.astype(jnp.float32)
            acc = wf[:, 0:1] * xf[0:1, :]
            for ci in range(1, c_in):
                acc = acc + wf[:, ci:ci + 1] * xf[ci:ci + 1, :]
        o_ref[bi] = _sigmoid(acc + b).astype(o_ref.dtype)


def _conv_sigmoid_splat_kernel(x_ref, w_ref, b_ref, o_ref):
    """Small-channel path with spatial on BOTH sublanes and lanes.
    x_ref: (bn, C_in, ss, 128) VMEM; w_ref: (C_out, C_in) SMEM; b_ref: (C_out,) SMEM;
    o_ref: (bn, C_out, ss, 128). Every vld/vst is fully dense and each weight is a
    free scalar splat from SMEM (no XLU sublane broadcasts)."""
    bn, c_in = x_ref.shape[0], x_ref.shape[1]
    c_out = o_ref.shape[1]
    for bi in range(bn):
        for co in range(c_out):
            acc = x_ref[bi, 0].astype(jnp.float32) * w_ref[co, 0]
            for ci in range(1, c_in):
                acc = acc + x_ref[bi, ci].astype(jnp.float32) * w_ref[co, ci]
            o_ref[bi, co] = _sigmoid(acc + b_ref[co]).astype(o_ref.dtype)


# ---------------------------------------------------------------------------
# Wrapper: 1x1x1 conv + sigmoid over (N, C_in, S)
# ---------------------------------------------------------------------------

def pointwise_conv_sigmoid(x_ncs, weight, bias):
    """x_ncs: (N, C_in, S); weight: (C_out, C_in); bias: (C_out,). -> (N, C_out, S)."""
    N, C_in, S = x_ncs.shape
    C_out = weight.shape[0]
    out_dtype = x_ncs.dtype

    vmem_cap = _vmem_capacity_bytes()
    # ~40% of VMEM for the double-buffered streamed tiles; leave headroom for the
    # resident weights, semaphores and compiler scratch (important under v7x 64 MiB).
    budget = int(vmem_cap * 0.4)
    vmem_limit = int(min(vmem_cap * 0.75, 112 * 1024 * 1024))

    x_it = x_ncs.dtype.itemsize
    o_it = jnp.dtype(out_dtype).itemsize
    bytes_per_spatial = 2 * (C_in * x_it + C_out * o_it)    # double-buffered in + out

    # MXU is near-free filler once the contraction is non-trivial.
    use_mxu = (C_in * C_out) >= 128

    if use_mxu and x_ncs.dtype == jnp.bfloat16:
        w = weight.astype(jnp.bfloat16)     # feed the MXU bf16 directly, f32 accumulate
    else:
        w = weight.astype(jnp.float32)
    b_f32 = bias.astype(jnp.float32)

    compiler_params = pltpu.CompilerParams(
        dimension_semantics=("parallel", "parallel"),
        vmem_limit_bytes=vmem_limit,
    )

    if (not use_mxu) and (S % 128 == 0) and S >= 128:
        # ---- scalar-splat VPU path: spatial viewed as (SS, 128) ----
        SS = S // 128
        ss_cap = _round_down(min(budget // max(1, bytes_per_spatial * 128),
                                 _MAX_TS // 128), 8)
        if SS <= ss_cap:
            ss_t = SS
            if N == 1 and SS >= 16:                 # keep >=2 grid steps for megacore
                ss_t = min(SS, _round_up((SS + 1) // 2, 8))
        else:
            ss_t = ss_cap
        bn = _pick_bn(N, S, bytes_per_spatial, budget, spatial_is_full=(ss_t == SS))

        grid = (N // bn, pl.cdiv(SS, ss_t))
        x_v = x_ncs.reshape(N, C_in, SS, 128)       # contiguous, free
        out = pl.pallas_call(
            _conv_sigmoid_splat_kernel,
            out_shape=jax.ShapeDtypeStruct((N, C_out, SS, 128), out_dtype),
            grid_spec=pltpu.PrefetchScalarGridSpec(
                num_scalar_prefetch=0,
                grid=grid,
                in_specs=[
                    pl.BlockSpec((bn, C_in, ss_t, 128), lambda n, s: (n, 0, s, 0)),
                    # Tiny weight/bias live in SMEM -> cheap per-(co,ci) scalar reads.
                    pl.BlockSpec(memory_space=pltpu.MemorySpace.SMEM),
                    pl.BlockSpec(memory_space=pltpu.MemorySpace.SMEM),
                ],
                out_specs=pl.BlockSpec((bn, C_out, ss_t, 128),
                                       lambda n, s: (n, 0, s, 0)),
            ),
            compiler_params=compiler_params,
        )(x_v, w, b_f32)
        return out.reshape(N, C_out, S)

    # ---- generic path: (bn, C_in, ts) tiles, spatial on the lane axis ----
    ts_cap = min(_MAX_TS, _round_down(budget // max(1, bytes_per_spatial), 128))
    if S <= ts_cap:
        ts = S
        if N == 1 and S >= 256:                     # keep >=2 grid steps for megacore
            ts = min(S, _round_up((S + 1) // 2, 128))
    else:
        ts = ts_cap
    bn = _pick_bn(N, S, bytes_per_spatial, budget, spatial_is_full=(ts == S))

    grid = (N // bn, pl.cdiv(S, ts))
    kernel = functools.partial(_conv_sigmoid_kernel, use_mxu=use_mxu)
    return pl.pallas_call(
        kernel,
        out_shape=jax.ShapeDtypeStruct((N, C_out, S), out_dtype),
        grid_spec=pltpu.PrefetchScalarGridSpec(
            num_scalar_prefetch=0,
            grid=grid,
            in_specs=[
                pl.BlockSpec((bn, C_in, ts), lambda n, s: (n, 0, s)),
                # Constant index_map -> weights/bias stay VMEM-resident across the grid.
                pl.BlockSpec((C_out, C_in), lambda n, s: (0, 0)),
                pl.BlockSpec((C_out, 1), lambda n, s: (0, 0)),
            ],
            out_specs=pl.BlockSpec((bn, C_out, ts), lambda n, s: (n, 0, s)),
        ),
        compiler_params=compiler_params,
    )(x_ncs, w, b_f32.reshape(C_out, 1))


# ---------------------------------------------------------------------------
# AdaptiveAvgPool3d (plain-JAX glue, exact PyTorch bin semantics)
# ---------------------------------------------------------------------------

def _adaptive_pool_matrix(in_size, out_size):
    """Row i averages PyTorch's bin [floor(i*in/out), ceil((i+1)*in/out))."""
    m = np.zeros((out_size, in_size), dtype=np.float32)
    for i in range(out_size):
        lo = (i * in_size) // out_size
        hi = -((-(i + 1) * in_size) // out_size)
        m[i, lo:hi] = 1.0 / (hi - lo)
    return jnp.asarray(m)


def adaptive_avg_pool3d(x, out_shape):
    """torch.nn.AdaptiveAvgPool3d equivalent (NCDHW)."""
    # TODO(synk): fuse this reduction into the Pallas kernel to avoid the extra
    # pooled-intermediate HBM round trip; today it is a separate XLA pass.
    N, C, D, H, W = x.shape
    od, oh, ow = out_shape
    if D % od == 0 and H % oh == 0 and W % ow == 0:
        # Divisible fast path: contiguous reshape + mean.
        xr = x.reshape(N, C, od, D // od, oh, H // oh, ow, W // ow)
        return xr.mean(axis=(3, 5, 7)).astype(x.dtype)
    # General (non-divisible) bins: contract with per-axis averaging matrices.
    ad = _adaptive_pool_matrix(D, od)
    ah = _adaptive_pool_matrix(H, oh)
    aw = _adaptive_pool_matrix(W, ow)
    y = jnp.einsum("ncdhw,ad->ncahw", x.astype(jnp.float32), ad)
    y = jnp.einsum("ncahw,bh->ncabw", y, ah)
    y = jnp.einsum("ncabw,ew->ncabe", y, aw)
    return y.astype(x.dtype)


# ---------------------------------------------------------------------------
# Module forward
# ---------------------------------------------------------------------------

def global_positioning_adaptor(x, weight, bias, adaptive_shape=None):
    """Forward of GlobalPositioningAdaptor.
    x: (N, C_in, D, H, W); weight: (C_out, C_in) or Conv3d weight (C_out, C_in, 1, 1, 1);
    bias: (C_out,). Returns (N, C_out, D', H', W')."""
    if weight.ndim == 5:
        weight = weight.reshape(weight.shape[0], weight.shape[1])
    if adaptive_shape is not None:
        x = adaptive_avg_pool3d(x, adaptive_shape)
    N, C_in, D, H, W = x.shape
    C_out = weight.shape[0]
    x_ncs = x.reshape(N, C_in, D * H * W)           # contiguous, free
    y = pointwise_conv_sigmoid(x_ncs, weight, bias)
    return y.reshape(N, C_out, D, H, W)


# ---------------------------------------------------------------------------
# Self-test
# ---------------------------------------------------------------------------

if __name__ == "__main__":
    key = jax.random.PRNGKey(0)
    k_x, k_w, k_b = jax.random.split(key, 3)

    N, C_in, C_out = 2, 4, 8
    D, H, W = 4, 8, 8                               # S = 256 -> exercises the splat VPU path
    x = jax.random.normal(k_x, (N, C_in, D, H, W), dtype=jnp.float32)
    weight = jax.random.normal(k_w, (C_out, C_in), dtype=jnp.float32) * 0.1
    bias = jax.random.normal(k_b, (C_out,), dtype=jnp.float32) * 0.1

    def ref_fn(xin, wgt, bs):
        return jax.nn.sigmoid(jnp.einsum("ncdhw,oc->nodhw", xin, wgt)
                              + bs[None, :, None, None, None])

    # Path 1: no adaptive pooling (scalar-splat VPU kernel, S % 128 == 0).
    out = jax.block_until_ready(global_positioning_adaptor(x, weight, bias))
    assert out.shape == (N, C_out, D, H, W)
    assert jnp.allclose(out, ref_fn(x, weight, bias), atol=1e-4), "mismatch (no pooling)"

    # Path 2: adaptive pooling, divisible bins (pooled S = 32 -> generic kernel).
    ashape = (2, 4, 4)
    out_p = jax.block_until_ready(global_positioning_adaptor(x, weight, bias, ashape))
    assert out_p.shape == (N, C_out) + ashape
    assert jnp.allclose(out_p, ref_fn(adaptive_avg_pool3d(x, ashape), weight, bias),
                        atol=1e-4), "mismatch (divisible pooling)"

    # Path 3: adaptive pooling, non-divisible bins (PyTorch bin semantics).
    ashape2 = (3, 5, 5)
    out_q = jax.block_until_ready(global_positioning_adaptor(x, weight, bias, ashape2))
    assert out_q.shape == (N, C_out) + ashape2
    assert jnp.allclose(out_q, ref_fn(adaptive_avg_pool3d(x, ashape2), weight, bias),
                        atol=1e-4), "mismatch (non-divisible pooling)"

    # Path 4: N == 1 (spatial split for megacore) + MXU contraction path.
    C_in2, C_out2 = 16, 16                          # C_in*C_out >= 128 -> MXU
    x2 = jax.random.normal(k_x, (1, C_in2, 4, 8, 8), dtype=jnp.float32)
    w2 = jax.random.normal(k_w, (C_out2, C_in2), dtype=jnp.float32) * 0.1
    b2 = jax.random.normal(k_b, (C_out2,), dtype=jnp.float32) * 0.1
    out2 = jax.block_until_ready(global_positioning_adaptor(x2, w2, b2))
    assert jnp.allclose(out2, ref_fn(x2, w2, b2), atol=1e-4), "mismatch (MXU path)"

    print("KERNEL_OK")
</pallas_src>

<mosaic_0001>
module attributes {stable_mosaic.version = 11 : i64} {
  func.func @_conv_sigmoid_splat_kernel(%arg0: i32, %arg1: i32, %arg2: memref<1x4x2x128xf32, #tpu.memory_space<vmem>>, %arg3: memref<8x4xf32, #tpu.memory_space<smem>>, %arg4: memref<8xf32, #tpu.memory_space<smem>>, %arg5: memref<1x8x2x128xf32, #tpu.memory_space<vmem>>) attributes {dimension_semantics = [#tpu.dimension_semantics<parallel>, #tpu.dimension_semantics<parallel>], iteration_bounds = array<i64: 2, 1>, scalar_prefetch = 0 : i64, scratch_operands = 0 : i64, tpu.core_type = #tpu.core_type<tc>, window_params = [{transform_indices = @transform_0, window_bounds = array<i64: 1, 4, 2, 128>}, {transform_indices = @transform_1, window_bounds = array<i64: 8, 4>}, {transform_indices = @transform_2, window_bounds = array<i64: 8>}, {transform_indices = @transform_3, window_bounds = array<i64: 1, 8, 2, 128>}]} {
    %c0 = arith.constant 0 : index
    %c0_0 = arith.constant 0 : index
    %c0_1 = arith.constant 0 : index
    %c0_2 = arith.constant 0 : index
    %0 = vector.load %arg2[%c0, %c0_0, %c0_1, %c0_2] : memref<1x4x2x128xf32, #tpu.memory_space<vmem>>, vector<1x1x2x128xf32>
    %1 = vector.shape_cast %0 : vector<1x1x2x128xf32> to vector<2x128xf32>
    %c0_3 = arith.constant 0 : index
    %c0_4 = arith.constant 0 : index
    %2 = memref.load %arg3[%c0_3, %c0_4] : memref<8x4xf32, #tpu.memory_space<smem>>
    %3 = vector.broadcast %2 : f32 to vector<2x128xf32>
    %4 = arith.mulf %1, %3 : vector<2x128xf32>
    %c0_5 = arith.constant 0 : index
    %c1 = arith.constant 1 : index
    %c0_6 = arith.constant 0 : index
    %c0_7 = arith.constant 0 : index
    %5 = vector.load %arg2[%c0_5, %c1, %c0_6, %c0_7] : memref<1x4x2x128xf32, #tpu.memory_space<vmem>>, vector<1x1x2x128xf32>
    %6 = vector.shape_cast %5 : vector<1x1x2x128xf32> to vector<2x128xf32>
    %c0_8 = arith.constant 0 : index
    %c1_9 = arith.constant 1 : index
    %7 = memref.load %arg3[%c0_8, %c1_9] : memref<8x4xf32, #tpu.memory_space<smem>>
    %8 = vector.broadcast %7 : f32 to vector<2x128xf32>
    %9 = arith.mulf %6, %8 : vector<2x128xf32>
    %10 = arith.addf %4, %9 : vector<2x128xf32>
    %c0_10 = arith.constant 0 : index
    %c2 = arith.constant 2 : index
    %c0_11 = arith.constant 0 : index
    %c0_12 = arith.constant 0 : index
    %11 = vector.load %arg2[%c0_10, %c2, %c0_11, %c0_12] : memref<1x4x2x128xf32, #tpu.memory_space<vmem>>, vector<1x1x2x128xf32>
    %12 = vector.shape_cast %11 : vector<1x1x2x128xf32> to vector<2x128xf32>
    %c0_13 = arith.constant 0 : index
    %c2_14 = arith.constant 2 : index
    %13 = memref.load %arg3[%c0_13, %c2_14] : memref<8x4xf32, #tpu.memory_space<smem>>
    %14 = vector.broadcast %13 : f32 to vector<2x128xf32>
    %15 = arith.mulf %12, %14 : vector<2x128xf32>
    %16 = arith.addf %10, %15 : vector<2x128xf32>
    %c0_15 = arith.constant 0 : index
    %c3 = arith.constant 3 : index
    %c0_16 = arith.constant 0 : index
    %c0_17 = arith.constant 0 : index
    %17 = vector.load %arg2[%c0_15, %c3, %c0_16, %c0_17] : memref<1x4x2x128xf32, #tpu.memory_space<vmem>>, vector<1x1x2x128xf32>
    %18 = vector.shape_cast %17 : vector<1x1x2x128xf32> to vector<2x128xf32>
    %c0_18 = arith.constant 0 : index
    %c3_19 = arith.constant 3 : index
    %19 = memref.load %arg3[%c0_18, %c3_19] : memref<8x4xf32, #tpu.memory_space<smem>>
    %20 = vector.broadcast %19 : f32 to vector<2x128xf32>
    %21 = arith.mulf %18, %20 : vector<2x128xf32>
    %22 = arith.addf %16, %21 : vector<2x128xf32>
    %c0_20 = arith.constant 0 : index
    %23 = memref.load %arg4[%c0_20] : memref<8xf32, #tpu.memory_space<smem>>
    %24 = vector.broadcast %23 : f32 to vector<2x128xf32>
    %25 = arith.addf %22, %24 : vector<2x128xf32>
    %cst = arith.constant -3.000000e+01 : f32
    %26 = vector.broadcast %cst : f32 to vector<2x128xf32>
    %27 = arith.maximumf %25, %26 : vector<2x128xf32>
    %cst_21 = arith.constant 0.000000e+00 : f32
    %28 = vector.broadcast %cst_21 : f32 to vector<2x128xf32>
    %29 = arith.subf %28, %27 : vector<2x128xf32>
    %30 = math.exp %29 : vector<2x128xf32>
    %cst_22 = arith.constant 1.000000e+00 : f32
    %31 = vector.broadcast %cst_22 : f32 to vector<2x128xf32>
    %32 = arith.addf %31, %30 : vector<2x128xf32>
    %33 = tpu.reciprocal %32 {approx = true} : vector<2x128xf32> -> vector<2x128xf32>
    %34 = arith.mulf %32, %33 : vector<2x128xf32>
    %cst_23 = arith.constant 2.000000e+00 : f32
    %35 = vector.broadcast %cst_23 : f32 to vector<2x128xf32>
    %36 = arith.subf %35, %34 : vector<2x128xf32>
    %37 = arith.mulf %33, %36 : vector<2x128xf32>
    %c0_24 = arith.constant 0 : index
    %c0_25 = arith.constant 0 : index
    %c0_26 = arith.constant 0 : index
    %c0_27 = arith.constant 0 : index
    %38 = vector.load %arg5[%c0_24, %c0_25, %c0_26, %c0_27] : memref<1x8x2x128xf32, #tpu.memory_space<vmem>>, vector<1x1x2x128xf32>
    %39 = vector.shape_cast %38 : vector<1x1x2x128xf32> to vector<2x128xf32>
    %40 = vector.shape_cast %37 : vector<2x128xf32> to vector<1x1x2x128xf32>
    tpu.vector_store %arg5[%c0_24, %c0_25, %c0_26, %c0_27], %40 {strides = array<i32>} : memref<1x8x2x128xf32, #tpu.memory_space<vmem>>, vector<1x1x2x128xf32>,
    %c0_28 = arith.constant 0 : index
    %c0_29 = arith.constant 0 : index
    %c0_30 = arith.constant 0 : index
    %c0_31 = arith.constant 0 : index
    %41 = vector.load %arg2[%c0_28, %c0_29, %c0_30, %c0_31] : memref<1x4x2x128xf32, #tpu.memory_space<vmem>>, vector<1x1x2x128xf32>
    %42 = vector.shape_cast %41 : vector<1x1x2x128xf32> to vector<2x128xf32>
    %c1_32 = arith.constant 1 : index
    %c0_33 = arith.constant 0 : index
    %43 = memref.load %arg3[%c1_32, %c0_33] : memref<8x4xf32, #tpu.memory_space<smem>>
    %44 = vector.broadcast %43 : f32 to vector<2x128xf32>
    %45 = arith.mulf %42, %44 : vector<2x128xf32>
    %c0_34 = arith.constant 0 : index
    %c1_35 = arith.constant 1 : index
    %c0_36 = arith.constant 0 : index
    %c0_37 = arith.constant 0 : index
    %46 = vector.load %arg2[%c0_34, %c1_35, %c0_36, %c0_37] : memref<1x4x2x128xf32, #tpu.memory_space<vmem>>, vector<1x1x2x128xf32>
    %47 = vector.shape_cast %46 : vector<1x1x2x128xf32> to vector<2x128xf32>
    %c1_38 = arith.constant 1 : index
    %c1_39 = arith.constant 1 : index
    %48 = memref.load %arg3[%c1_38, %c1_39] : memref<8x4xf32, #tpu.memory_space<smem>>
    %49 = vector.broadcast %48 : f32 to vector<2x128xf32>
    %50 = arith.mulf %47, %49 : vector<2x128xf32>
    %51 = arith.addf %45, %50 : vector<2x128xf32>
    %c0_40 = arith.constant 0 : index
    %c2_41 = arith.constant 2 : index
    %c0_42 = arith.constant 0 : index
    %c0_43 = arith.constant 0 : index
    %52 = vector.load %arg2[%c0_40, %c2_41, %c0_42, %c0_43] : memref<1x4x2x128xf32, #tpu.memory_space<vmem>>, vector<1x1x2x128xf32>
    %53 = vector.shape_cast %52 : vector<1x1x2x128xf32> to vector<2x128xf32>
    %c1_44 = arith.constant 1 : index
    %c2_45 = arith.constant 2 : index
    %54 = memref.load %arg3[%c1_44, %c2_45] : memref<8x4xf32, #tpu.memory_space<smem>>
    %55 = vector.broadcast %54 : f32 to vector<2x128xf32>
    %56 = arith.mulf %53, %55 : vector<2x128xf32>
    %57 = arith.addf %51, %56 : vector<2x128xf32>
    %c0_46 = arith.constant 0 : index
    %c3_47 = arith.constant 3 : index
    %c0_48 = arith.constant 0 : index
    %c0_49 = arith.constant 0 : index
    %58 = vector.load %arg2[%c0_46, %c3_47, %c0_48, %c0_49] : memref<1x4x2x128xf32, #tpu.memory_space<vmem>>, vector<1x1x2x128xf32>
    %59 = vector.shape_cast %58 : vector<1x1x2x128xf32> to vector<2x128xf32>
    %c1_50 = arith.constant 1 : index
    %c3_51 = arith.constant 3 : index
    %60 = memref.load %arg3[%c1_50, %c3_51] : memref<8x4xf32, #tpu.memory_space<smem>>
    %61 = vector.broadcast %60 : f32 to vector<2x128xf32>
    %62 = arith.mulf %59, %61 : vector<2x128xf32>
    %63 = arith.addf %57, %62 : vector<2x128xf32>
    %c1_52 = arith.constant 1 : index
    %64 = memref.load %arg4[%c1_52] : memref<8xf32, #tpu.memory_space<smem>>
    %65 = vector.broadcast %64 : f32 to vector<2x128xf32>
    %66 = arith.addf %63, %65 : vector<2x128xf32>
    %cst_53 = arith.constant -3.000000e+01 : f32
    %67 = vector.broadcast %cst_53 : f32 to vector<2x128xf32>
    %68 = arith.maximumf %66, %67 : vector<2x128xf32>
    %cst_54 = arith.constant 0.000000e+00 : f32
    %69 = vector.broadcast %cst_54 : f32 to vector<2x128xf32>
    %70 = arith.subf %69, %68 : vector<2x128xf32>
    %71 = math.exp %70 : vector<2x128xf32>
    %cst_55 = arith.constant 1.000000e+00 : f32
    %72 = vector.broadcast %cst_55 : f32 to vector<2x128xf32>
    %73 = arith.addf %72, %71 : vector<2x128xf32>
    %74 = tpu.reciprocal %73 {approx = true} : vector<2x128xf32> -> vector<2x128xf32>
    %75 = arith.mulf %73, %74 : vector<2x128xf32>
    %cst_56 = arith.constant 2.000000e+00 : f32
    %76 = vector.broadcast %cst_56 : f32 to vector<2x128xf32>
    %77 = arith.subf %76, %75 : vector<2x128xf32>
    %78 = arith.mulf %74, %77 : vector<2x128xf32>
    %c0_57 = arith.constant 0 : index
    %c1_58 = arith.constant 1 : index
    %c0_59 = arith.constant 0 : index
    %c0_60 = arith.constant 0 : index
    %79 = vector.load %arg5[%c0_57, %c1_58, %c0_59, %c0_60] : memref<1x8x2x128xf32, #tpu.memory_space<vmem>>, vector<1x1x2x128xf32>
    %80 = vector.shape_cast %79 : vector<1x1x2x128xf32> to vector<2x128xf32>
    %81 = vector.shape_cast %78 : vector<2x128xf32> to vector<1x1x2x128xf32>
    tpu.vector_store %arg5[%c0_57, %c1_58, %c0_59, %c0_60], %81 {strides = array<i32>} : memref<1x8x2x128xf32, #tpu.memory_space<vmem>>, vector<1x1x2x128xf32>,
    %c0_61 = arith.constant 0 : index
    %c0_62 = arith.constant 0 : index
    %c0_63 = arith.constant 0 : index
    %c0_64 = arith.constant 0 : index
    %82 = vector.load %arg2[%c0_61, %c0_62, %c0_63, %c0_64] : memref<1x4x2x128xf32, #tpu.memory_space<vmem>>, vector<1x1x2x128xf32>
    %83 = vector.shape_cast %82 : vector<1x1x2x128xf32> to vector<2x128xf32>
    %c2_65 = arith.constant 2 : index
    %c0_66 = arith.constant 0 : index
    %84 = memref.load %arg3[%c2_65, %c0_66] : memref<8x4xf32, #tpu.memory_space<smem>>
    %85 = vector.broadcast %84 : f32 to vector<2x128xf32>
    %86 = arith.mulf %83, %85 : vector<2x128xf32>
    %c0_67 = arith.constant 0 : index
    %c1_68 = arith.constant 1 : index
    %c0_69 = arith.constant 0 : index
    %c0_70 = arith.constant 0 : index
    %87 = vector.load %arg2[%c0_67, %c1_68, %c0_69, %c0_70] : memref<1x4x2x128xf32, #tpu.memory_space<vmem>>, vector<1x1x2x128xf32>
    %88 = vector.shape_cast %87 : vector<1x1x2x128xf32> to vector<2x128xf32>
    %c2_71 = arith.constant 2 : index
    %c1_72 = arith.constant 1 : index
    %89 = memref.load %arg3[%c2_71, %c1_72] : memref<8x4xf32, #tpu.memory_space<smem>>
    %90 = vector.broadcast %89 : f32 to vector<2x128xf32>
    %91 = arith.mulf %88, %90 : vector<2x128xf32>
    %92 = arith.addf %86, %91 : vector<2x128xf32>
    %c0_73 = arith.constant 0 : index
    %c2_74 = arith.constant 2 : index
    %c0_75 = arith.constant 0 : index
    %c0_76 = arith.constant 0 : index
    %93 = vector.load %arg2[%c0_73, %c2_74, %c0_75, %c0_76] : memref<1x4x2x128xf32, #tpu.memory_space<vmem>>, vector<1x1x2x128xf32>
    %94 = vector.shape_cast %93 : vector<1x1x2x128xf32> to vector<2x128xf32>
    %c2_77 = arith.constant 2 : index
    %c2_78 = arith.constant 2 : index
    %95 = memref.load %arg3[%c2_77, %c2_78] : memref<8x4xf32, #tpu.memory_space<smem>>
    %96 = vector.broadcast %95 : f32 to vector<2x128xf32>
    %97 = arith.mulf %94, %96 : vector<2x128xf32>
    %98 = arith.addf %92, %97 : vector<2x128xf32>
    %c0_79 = arith.constant 0 : index
    %c3_80 = arith.constant 3 : index
    %c0_81 = arith.constant 0 : index
    %c0_82 = arith.constant 0 : index
    %99 = vector.load %arg2[%c0_79, %c3_80, %c0_81, %c0_82] : memref<1x4x2x128xf32, #tpu.memory_space<vmem>>, vector<1x1x2x128xf32>
    %100 = vector.shape_cast %99 : vector<1x1x2x128xf32> to vector<2x128xf32>
    %c2_83 = arith.constant 2 : index
    %c3_84 = arith.constant 3 : index
    %101 = memref.load %arg3[%c2_83, %c3_84] : memref<8x4xf32, #tpu.memory_space<smem>>
    %102 = vector.broadcast %101 : f32 to vector<2x128xf32>
    %103 = arith.mulf %100, %102 : vector<2x128xf32>
    %104 = arith.addf %98, %103 : vector<2x128xf32>
    %c2_85 = arith.constant 2 : index
    %105 = memref.load %arg4[%c2_85] : memref<8xf32, #tpu.memory_space<smem>>
    %106 = vector.broadcast %105 : f32 to vector<2x128xf32>
    %107 = arith.addf %104, %106 : vector<2x128xf32>
    %cst_86 = arith.constant -3.000000e+01 : f32
    %108 = vector.broadcast %cst_86 : f32 to vector<2x128xf32>
    %109 = arith.maximumf %107, %108 : vector<2x128xf32>
    %cst_87 = arith.constant 0.000000e+00 : f32
    %110 = vector.broadcast %cst_87 : f32 to vector<2x128xf32>
    %111 = arith.subf %110, %109 : vector<2x128xf32>
    %112 = math.exp %111 : vector<2x128xf32>
    %cst_88 = arith.constant 1.000000e+00 : f32
    %113 = vector.broadcast %cst_88 : f32 to vector<2x128xf32>
    %114 = arith.addf %113, %112 : vector<2x128xf32>
    %115 = tpu.reciprocal %114 {approx = true} : vector<2x128xf32> -> vector<2x128xf32>
    %116 = arith.mulf %114, %115 : vector<2x128xf32>
    %cst_89 = arith.constant 2.000000e+00 : f32
    %117 = vector.broadcast %cst_89 : f32 to vector<2x128xf32>
    %118 = arith.subf %117, %116 : vector<2x128xf32>
    %119 = arith.mulf %115, %118 : vector<2x128xf32>
    %c0_90 = arith.constant 0 : index
    %c2_91 = arith.constant 2 : index
    %c0_92 = arith.constant 0 : index
    %c0_93 = arith.constant 0 : index
    %120 = vector.load %arg5[%c0_90, %c2_91, %c0_92, %c0_93] : memref<1x8x2x128xf32, #tpu.memory_space<vmem>>, vector<1x1x2x128xf32>
    %121 = vector.shape_cast %120 : vector<1x1x2x128xf32> to vector<2x128xf32>
    %122 = vector.shape_cast %119 : vector<2x128xf32> to vector<1x1x2x128xf32>
    tpu.vector_store %arg5[%c0_90, %c2_91, %c0_92, %c0_93], %122 {strides = array<i32>} : memref<1x8x2x128xf32, #tpu.memory_space<vmem>>, vector<1x1x2x128xf32>,
    %c0_94 = arith.constant 0 : index
    %c0_95 = arith.constant 0 : index
    %c0_96 = arith.constant 0 : index
    %c0_97 = arith.constant 0 : index
    %123 = vector.load %arg2[%c0_94, %c0_95, %c0_96, %c0_97] : memref<1x4x2x128xf32, #tpu.memory_space<vmem>>, vector<1x1x2x128xf32>
    %124 = vector.shape_cast %123 : vector<1x1x2x128xf32> to vector<2x128xf32>
    %c3_98 = arith.constant 3 : index
    %c0_99 = arith.constant 0 : index
    %125 = memref.load %arg3[%c3_98, %c0_99] : memref<8x4xf32, #tpu.memory_space<smem>>
    %126 = vector.broadcast %125 : f32 to vector<2x128xf32>
    %127 = arith.mulf %124, %126 : vector<2x128xf32>
    %c0_100 = arith.constant 0 : index
    %c1_101 = arith.constant 1 : index
    %c0_102 = arith.constant 0 : index
    %c0_103 = arith.constant 0 : index
    %128 = vector.load %arg2[%c0_100, %c1_101, %c0_102, %c0_103] : memref<1x4x2x128xf32, #tpu.memory_space<vmem>>, vector<1x1x2x128xf32>
    %129 = vector.shape_cast %128 : vector<1x1x2x128xf32> to vector<2x128xf32>
    %c3_104 = arith.constant 3 : index
    %c1_105 = arith.constant 1 : index
    %130 = memref.load %arg3[%c3_104, %c1_105] : memref<8x4xf32, #tpu.memory_space<smem>>
    %131 = vector.broadcast %130 : f32 to vector<2x128xf32>
    %132 = arith.mulf %129, %131 : vector<2x128xf32>
    %133 = arith.addf %127, %132 : vector<2x128xf32>
    %c0_106 = arith.constant 0 : index
    %c2_107 = arith.constant 2 : index
    %c0_108 = arith.constant 0 : index
    %c0_109 = arith.constant 0 : index
    %134 = vector.load %arg2[%c0_106, %c2_107, %c0_108, %c0_109] : memref<1x4x2x128xf32, #tpu.memory_space<vmem>>, vector<1x1x2x128xf32>
    %135 = vector.shape_cast %134 : vector<1x1x2x128xf32> to vector<2x128xf32>
    %c3_110 = arith.constant 3 : index
    %c2_111 = arith.constant 2 : index
    %136 = memref.load %arg3[%c3_110, %c2_111] : memref<8x4xf32, #tpu.memory_space<smem>>
    %137 = vector.broadcast %136 : f32 to vector<2x128xf32>
    %138 = arith.mulf %135, %137 : vector<2x128xf32>
    %139 = arith.addf %133, %138 : vector<2x128xf32>
    %c0_112 = arith.constant 0 : index
    %c3_113 = arith.constant 3 : index
    %c0_114 = arith.constant 0 : index
    %c0_115 = arith.constant 0 : index
    %140 = vector.load %arg2[%c0_112, %c3_113, %c0_114, %c0_115] : memref<1x4x2x128xf32, #tpu.memory_space<vmem>>, vector<1x1x2x128xf32>
    %141 = vector.shape_cast %140 : vector<1x1x2x128xf32> to vector<2x128xf32>
    %c3_116 = arith.constant 3 : index
    %c3_117 = arith.constant 3 : index
    %142 = memref.load %arg3[%c3_116, %c3_117] : memref<8x4xf32, #tpu.memory_space<smem>>
    %143 = vector.broadcast %142 : f32 to vector<2x128xf32>
    %144 = arith.mulf %141, %143 : vector<2x128xf32>
    %145 = arith.addf %139, %144 : vector<2x128xf32>
    %c3_118 = arith.constant 3 : index
    %146 = memref.load %arg4[%c3_118] : memref<8xf32, #tpu.memory_space<smem>>
    %147 = vector.broadcast %146 : f32 to vector<2x128xf32>
    %148 = arith.addf %145, %147 : vector<2x128xf32>
    %cst_119 = arith.constant -3.000000e+01 : f32
    %149 = vector.broadcast %cst_119 : f32 to vector<2x128xf32>
    %150 = arith.maximumf %148, %149 : vector<2x128xf32>
    %cst_120 = arith.constant 0.000000e+00 : f32
    %151 = vector.broadcast %cst_120 : f32 to vector<2x128xf32>
    %152 = arith.subf %151, %150 : vector<2x128xf32>
    %153 = math.exp %152 : vector<2x128xf32>
    %cst_121 = arith.constant 1.000000e+00 : f32
    %154 = vector.broadcast %cst_121 : f32 to vector<2x128xf32>
    %155 = arith.addf %154, %153 : vector<2x128xf32>
    %156 = tpu.reciprocal %155 {approx = true} : vector<2x128xf32> -> vector<2x128xf32>
    %157 = arith.mulf %155, %156 : vector<2x128xf32>
    %cst_122 = arith.constant 2.000000e+00 : f32
    %158 = vector.broadcast %cst_122 : f32 to vector<2x128xf32>
    %159 = arith.subf %158, %157 : vector<2x128xf32>
    %160 = arith.mulf %156, %159 : vector<2x128xf32>
    %c0_123 = arith.constant 0 : index
    %c3_124 = arith.constant 3 : index
    %c0_125 = arith.constant 0 : index
    %c0_126 = arith.constant 0 : index
    %161 = vector.load %arg5[%c0_123, %c3_124, %c0_125, %c0_126] : memref<1x8x2x128xf32, #tpu.memory_space<vmem>>, vector<1x1x2x128xf32>
    %162 = vector.shape_cast %161 : vector<1x1x2x128xf32> to vector<2x128xf32>
    %163 = vector.shape_cast %160 : vector<2x128xf32> to vector<1x1x2x128xf32>
    tpu.vector_store %arg5[%c0_123, %c3_124, %c0_125, %c0_126], %163 {strides = array<i32>} : memref<1x8x2x128xf32, #tpu.memory_space<vmem>>, vector<1x1x2x128xf32>,
    %c0_127 = arith.constant 0 : index
    %c0_128 = arith.constant 0 : index
    %c0_129 = arith.constant 0 : index
    %c0_130 = arith.constant 0 : index
    %164 = vector.load %arg2[%c0_127, %c0_128, %c0_129, %c0_130] : memref<1x4x2x128xf32, #tpu.memory_space<vmem>>, vector<1x1x2x128xf32>
    %165 = vector.shape_cast %164 : vector<1x1x2x128xf32> to vector<2x128xf32>
    %c4 = arith.constant 4 : index
    %c0_131 = arith.constant 0 : index
    %166 = memref.load %arg3[%c4, %c0_131] : memref<8x4xf32, #tpu.memory_space<smem>>
    %167 = vector.broadcast %166 : f32 to vector<2x128xf32>
    %168 = arith.mulf %165, %167 : vector<2x128xf32>
    %c0_132 = arith.constant 0 : index
    %c1_133 = arith.constant 1 : index
    %c0_134 = arith.constant 0 : index
    %c0_135 = arith.constant 0 : index
    %169 = vector.load %arg2[%c0_132, %c1_133, %c0_134, %c0_135] : memref<1x4x2x128xf32, #tpu.memory_space<vmem>>, vector<1x1x2x128xf32>
    %170 = vector.shape_cast %169 : vector<1x1x2x128xf32> to vector<2x128xf32>
    %c4_136 = arith.constant 4 : index
    %c1_137 = arith.constant 1 : index
    %171 = memref.load %arg3[%c4_136, %c1_137] : memref<8x4xf32, #tpu.memory_space<smem>>
    %172 = vector.broadcast %171 : f32 to vector<2x128xf32>
    %173 = arith.mulf %170, %172 : vector<2x128xf32>
    %174 = arith.addf %168, %173 : vector<2x128xf32>
    %c0_138 = arith.constant 0 : index
    %c2_139 = arith.constant 2 : index
    %c0_140 = arith.constant 0 : index
    %c0_141 = arith.constant 0 : index
    %175 = vector.load %arg2[%c0_138, %c2_139, %c0_140, %c0_141] : memref<1x4x2x128xf32, #tpu.memory_space<vmem>>, vector<1x1x2x128xf32>
    %176 = vector.shape_cast %175 : vector<1x1x2x128xf32> to vector<2x128xf32>
    %c4_142 = arith.constant 4 : index
    %c2_143 = arith.constant 2 : index
    %177 = memref.load %arg3[%c4_142, %c2_143] : memref<8x4xf32, #tpu.memory_space<smem>>
    %178 = vector.broadcast %177 : f32 to vector<2x128xf32>
    %179 = arith.mulf %176, %178 : vector<2x128xf32>
    %180 = arith.addf %174, %179 : vector<2x128xf32>
    %c0_144 = arith.constant 0 : index
    %c3_145 = arith.constant 3 : index
    %c0_146 = arith.constant 0 : index
    %c0_147 = arith.constant 0 : index
    %181 = vector.load %arg2[%c0_144, %c3_145, %c0_146, %c0_147] : memref<1x4x2x128xf32, #tpu.memory_space<vmem>>, vector<1x1x2x128xf32>
    %182 = vector.shape_cast %181 : vector<1x1x2x128xf32> to vector<2x128xf32>
    %c4_148 = arith.constant 4 : index
    %c3_149 = arith.constant 3 : index
    %183 = memref.load %arg3[%c4_148, %c3_149] : memref<8x4xf32, #tpu.memory_space<smem>>
    %184 = vector.broadcast %183 : f32 to vector<2x128xf32>
    %185 = arith.mulf %182, %184 : vector<2x128xf32>
    %186 = arith.addf %180, %185 : vector<2x128xf32>
    %c4_150 = arith.constant 4 : index
    %187 = memref.load %arg4[%c4_150] : memref<8xf32, #tpu.memory_space<smem>>
    %188 = vector.broadcast %187 : f32 to vector<2x128xf32>
    %189 = arith.addf %186, %188 : vector<2x128xf32>
    %cst_151 = arith.constant -3.000000e+01 : f32
    %190 = vector.broadcast %cst_151 : f32 to vector<2x128xf32>
    %191 = arith.maximumf %189, %190 : vector<2x128xf32>
    %cst_152 = arith.constant 0.000000e+00 : f32
    %192 = vector.broadcast %cst_152 : f32 to vector<2x128xf32>
    %193 = arith.subf %192, %191 : vector<2x128xf32>
    %194 = math.exp %193 : vector<2x128xf32>
    %cst_153 = arith.constant 1.000000e+00 : f32
    %195 = vector.broadcast %cst_153 : f32 to vector<2x128xf32>
    %196 = arith.addf %195, %194 : vector<2x128xf32>
    %197 = tpu.reciprocal %196 {approx = true} : vector<2x128xf32> -> vector<2x128xf32>
    %198 = arith.mulf %196, %197 : vector<2x128xf32>
    %cst_154 = arith.constant 2.000000e+00 : f32
    %199 = vector.broadcast %cst_154 : f32 to vector<2x128xf32>
    %200 = arith.subf %199, %198 : vector<2x128xf32>
    %201 = arith.mulf %197, %200 : vector<2x128xf32>
    %c0_155 = arith.constant 0 : index
    %c4_156 = arith.constant 4 : index
    %c0_157 = arith.constant 0 : index
    %c0_158 = arith.constant 0 : index
    %202 = vector.load %arg5[%c0_155, %c4_156, %c0_157, %c0_158] : memref<1x8x2x128xf32, #tpu.memory_space<vmem>>, vector<1x1x2x128xf32>
    %203 = vector.shape_cast %202 : vector<1x1x2x128xf32> to vector<2x128xf32>
    %204 = vector.shape_cast %201 : vector<2x128xf32> to vector<1x1x2x128xf32>
    tpu.vector_store %arg5[%c0_155, %c4_156, %c0_157, %c0_158], %204 {strides = array<i32>} : memref<1x8x2x128xf32, #tpu.memory_space<vmem>>, vector<1x1x2x128xf32>,
    %c0_159 = arith.constant 0 : index
    %c0_160 = arith.constant 0 : index
    %c0_161 = arith.constant 0 : index
    %c0_162 = arith.constant 0 : index
    %205 = vector.load %arg2[%c0_159, %c0_160, %c0_161, %c0_162] : memref<1x4x2x128xf32, #tpu.memory_space<vmem>>, vector<1x1x2x128xf32>
    %206 = vector.shape_cast %205 : vector<1x1x2x128xf32> to vector<2x128xf32>
    %c5 = arith.constant 5 : index
    %c0_163 = arith.constant 0 : index
    %207 = memref.load %arg3[%c5, %c0_163] : memref<8x4xf32, #tpu.memory_space<smem>>
    %208 = vector.broadcast %207 : f32 to vector<2x128xf32>
    %209 = arith.mulf %206, %208 : vector<2x128xf32>
    %c0_164 = arith.constant 0 : index
    %c1_165 = arith.constant 1 : index
    %c0_166 = arith.constant 0 : index
    %c0_167 = arith.constant 0 : index
    %210 = vector.load %arg2[%c0_164, %c1_165, %c0_166, %c0_167] : memref<1x4x2x128xf32, #tpu.memory_space<vmem>>, vector<1x1x2x128xf32>
    %211 = vector.shape_cast %210 : vector<1x1x2x128xf32> to vector<2x128xf32>
    %c5_168 = arith.constant 5 : index
    %c1_169 = arith.constant 1 : index
    %212 = memref.load %arg3[%c5_168, %c1_169] : memref<8x4xf32, #tpu.memory_space<smem>>
    %213 = vector.broadcast %212 : f32 to vector<2x128xf32>
    %214 = arith.mulf %211, %213 : vector<2x128xf32>
    %215 = arith.addf %209, %214 : vector<2x128xf32>
    %c0_170 = arith.constant 0 : index
    %c2_171 = arith.constant 2 : index
    %c0_172 = arith.constant 0 : index
    %c0_173 = arith.constant 0 : index
    %216 = vector.load %arg2[%c0_170, %c2_171, %c0_172, %c0_173] : memref<1x4x2x128xf32, #tpu.memory_space<vmem>>, vector<1x1x2x128xf32>
    %217 = vector.shape_cast %216 : vector<1x1x2x128xf32> to vector<2x128xf32>
    %c5_174 = arith.constant 5 : index
    %c2_175 = arith.constant 2 : index
    %218 = memref.load %arg3[%c5_174, %c2_175] : memref<8x4xf32, #tpu.memory_space<smem>>
    %219 = vector.broadcast %218 : f32 to vector<2x128xf32>
    %220 = arith.mulf %217, %219 : vector<2x128xf32>
    %221 = arith.addf %215, %220 : vector<2x128xf32>
    %c0_176 = arith.constant 0 : index
    %c3_177 = arith.constant 3 : index
    %c0_178 = arith.constant 0 : index
    %c0_179 = arith.constant 0 : index
    %222 = vector.load %arg2[%c0_176, %c3_177, %c0_178, %c0_179] : memref<1x4x2x128xf32, #tpu.memory_space<vmem>>, vector<1x1x2x128xf32>
    %223 = vector.shape_cast %222 : vector<1x1x2x128xf32> to vector<2x128xf32>
    %c5_180 = arith.constant 5 : index
    %c3_181 = arith.constant 3 : index
    %224 = memref.load %arg3[%c5_180, %c3_181] : memref<8x4xf32, #tpu.memory_space<smem>>
    %225 = vector.broadcast %224 : f32 to vector<2x128xf32>
    %226 = arith.mulf %223, %225 : vector<2x128xf32>
    %227 = arith.addf %221, %226 : vector<2x128xf32>
    %c5_182 = arith.constant 5 : index
    %228 = memref.load %arg4[%c5_182] : memref<8xf32, #tpu.memory_space<smem>>
    %229 = vector.broadcast %228 : f32 to vector<2x128xf32>
    %230 = arith.addf %227, %229 : vector<2x128xf32>
    %cst_183 = arith.constant -3.000000e+01 : f32
    %231 = vector.broadcast %cst_183 : f32 to vector<2x128xf32>
    %232 = arith.maximumf %230, %231 : vector<2x128xf32>
    %cst_184 = arith.constant 0.000000e+00 : f32
    %233 = vector.broadcast %cst_184 : f32 to vector<2x128xf32>
    %234 = arith.subf %233, %232 : vector<2x128xf32>
    %235 = math.exp %234 : vector<2x128xf32>
    %cst_185 = arith.constant 1.000000e+00 : f32
    %236 = vector.broadcast %cst_185 : f32 to vector<2x128xf32>
    %237 = arith.addf %236, %235 : vector<2x128xf32>
    %238 = tpu.reciprocal %237 {approx = true} : vector<2x128xf32> -> vector<2x128xf32>
    %239 = arith.mulf %237, %238 : vector<2x128xf32>
    %cst_186 = arith.constant 2.000000e+00 : f32
    %240 = vector.broadcast %cst_186 : f32 to vector<2x128xf32>
    %241 = arith.subf %240, %239 : vector<2x128xf32>
    %242 = arith.mulf %238, %241 : vector<2x128xf32>
    %c0_187 = arith.constant 0 : index
    %c5_188 = arith.constant 5 : index
    %c0_189 = arith.constant 0 : index
    %c0_190 = arith.constant 0 : index
    %243 = vector.load %arg5[%c0_187, %c5_188, %c0_189, %c0_190] : memref<1x8x2x128xf32, #tpu.memory_space<vmem>>, vector<1x1x2x128xf32>
    %244 = vector.shape_cast %243 : vector<1x1x2x128xf32> to vector<2x128xf32>
    %245 = vector.shape_cast %242 : vector<2x128xf32> to vector<1x1x2x128xf32>
    tpu.vector_store %arg5[%c0_187, %c5_188, %c0_189, %c0_190], %245 {strides = array<i32>} : memref<1x8x2x128xf32, #tpu.memory_space<vmem>>, vector<1x1x2x128xf32>,
    %c0_191 = arith.constant 0 : index
    %c0_192 = arith.constant 0 : index
    %c0_193 = arith.constant 0 : index
    %c0_194 = arith.constant 0 : index
    %246 = vector.load %arg2[%c0_191, %c0_192, %c0_193, %c0_194] : memref<1x4x2x128xf32, #tpu.memory_space<vmem>>, vector<1x1x2x128xf32>
    %247 = vector.shape_cast %246 : vector<1x1x2x128xf32> to vector<2x128xf32>
    %c6 = arith.constant 6 : index
    %c0_195 = arith.constant 0 : index
    %248 = memref.load %arg3[%c6, %c0_195] : memref<8x4xf32, #tpu.memory_space<smem>>
    %249 = vector.broadcast %248 : f32 to vector<2x128xf32>
    %250 = arith.mulf %247, %249 : vector<2x128xf32>
    %c0_196 = arith.constant 0 : index
    %c1_197 = arith.constant 1 : index
    %c0_198 = arith.constant 0 : index
    %c0_199 = arith.constant 0 : index
    %251 = vector.load %arg2[%c0_196, %c1_197, %c0_198, %c0_199] : memref<1x4x2x128xf32, #tpu.memory_space<vmem>>, vector<1x1x2x128xf32>
    %252 = vector.shape_cast %251 : vector<1x1x2x128xf32> to vector<2x128xf32>
    %c6_200 = arith.constant 6 : index
    %c1_201 = arith.constant 1 : index
    %253 = memref.load %arg3[%c6_200, %c1_201] : memref<8x4xf32, #tpu.memory_space<smem>>
    %254 = vector.broadcast %253 : f32 to vector<2x128xf32>
    %255 = arith.mulf %252, %254 : vector<2x128xf32>
    %256 = arith.addf %250, %255 : vector<2x128xf32>
    %c0_202 = arith.constant 0 : index
    %c2_203 = arith.constant 2 : index
    %c0_204 = arith.constant 0 : index
    %c0_205 = arith.constant 0 : index
    %257 = vector.load %arg2[%c0_202, %c2_203, %c0_204, %c0_205] : memref<1x4x2x128xf32, #tpu.memory_space<vmem>>, vector<1x1x2x128xf32>
    %258 = vector.shape_cast %257 : vector<1x1x2x128xf32> to vector<2x128xf32>
    %c6_206 = arith.constant 6 : index
    %c2_207 = arith.constant 2 : index
    %259 = memref.load %arg3[%c6_206, %c2_207] : memref<8x4xf32, #tpu.memory_space<smem>>
    %260 = vector.broadcast %259 : f32 to vector<2x128xf32>
    %261 = arith.mulf %258, %260 : vector<2x128xf32>
    %262 = arith.addf %256, %261 : vector<2x128xf32>
    %c0_208 = arith.constant 0 : index
    %c3_209 = arith.constant 3 : index
    %c0_210 = arith.constant 0 : index
    %c0_211 = arith.constant 0 : index
    %263 = vector.load %arg2[%c0_208, %c3_209, %c0_210, %c0_211] : memref<1x4x2x128xf32, #tpu.memory_space<vmem>>, vector<1x1x2x128xf32>
    %264 = vector.shape_cast %263 : vector<1x1x2x128xf32> to vector<2x128xf32>
    %c6_212 = arith.constant 6 : index
    %c3_213 = arith.constant 3 : index
    %265 = memref.load %arg3[%c6_212, %c3_213] : memref<8x4xf32, #tpu.memory_space<smem>>
    %266 = vector.broadcast %265 : f32 to vector<2x128xf32>
    %267 = arith.mulf %264, %266 : vector<2x128xf32>
    %268 = arith.addf %262, %267 : vector<2x128xf32>
    %c6_214 = arith.constant 6 : index
    %269 = memref.load %arg4[%c6_214] : memref<8xf32, #tpu.memory_space<smem>>
    %270 = vector.broadcast %269 : f32 to vector<2x128xf32>
    %271 = arith.addf %268, %270 : vector<2x128xf32>
    %cst_215 = arith.constant -3.000000e+01 : f32
    %272 = vector.broadcast %cst_215 : f32 to vector<2x128xf32>
    %273 = arith.maximumf %271, %272 : vector<2x128xf32>
    %cst_216 = arith.constant 0.000000e+00 : f32
    %274 = vector.broadcast %cst_216 : f32 to vector<2x128xf32>
    %275 = arith.subf %274, %273 : vector<2x128xf32>
    %276 = math.exp %275 : vector<2x128xf32>
    %cst_217 = arith.constant 1.000000e+00 : f32
    %277 = vector.broadcast %cst_217 : f32 to vector<2x128xf32>
    %278 = arith.addf %277, %276 : vector<2x128xf32>
    %279 = tpu.reciprocal %278 {approx = true} : vector<2x128xf32> -> vector<2x128xf32>
    %280 = arith.mulf %278, %279 : vector<2x128xf32>
    %cst_218 = arith.constant 2.000000e+00 : f32
    %281 = vector.broadcast %cst_218 : f32 to vector<2x128xf32>
    %282 = arith.subf %281, %280 : vector<2x128xf32>
    %283 = arith.mulf %279, %282 : vector<2x128xf32>
    %c0_219 = arith.constant 0 : index
    %c6_220 = arith.constant 6 : index
    %c0_221 = arith.constant 0 : index
    %c0_222 = arith.constant 0 : index
    %284 = vector.load %arg5[%c0_219, %c6_220, %c0_221, %c0_222] : memref<1x8x2x128xf32, #tpu.memory_space<vmem>>, vector<1x1x2x128xf32>
    %285 = vector.shape_cast %284 : vector<1x1x2x128xf32> to vector<2x128xf32>
    %286 = vector.shape_cast %283 : vector<2x128xf32> to vector<1x1x2x128xf32>
    tpu.vector_store %arg5[%c0_219, %c6_220, %c0_221, %c0_222], %286 {strides = array<i32>} : memref<1x8x2x128xf32, #tpu.memory_space<vmem>>, vector<1x1x2x128xf32>,
    %c0_223 = arith.constant 0 : index
    %c0_224 = arith.constant 0 : index
    %c0_225 = arith.constant 0 : index
    %c0_226 = arith.constant 0 : index
    %287 = vector.load %arg2[%c0_223, %c0_224, %c0_225, %c0_226] : memref<1x4x2x128xf32, #tpu.memory_space<vmem>>, vector<1x1x2x128xf32>
    %288 = vector.shape_cast %287 : vector<1x1x2x128xf32> to vector<2x128xf32>
    %c7 = arith.constant 7 : index
    %c0_227 = arith.constant 0 : index
    %289 = memref.load %arg3[%c7, %c0_227] : memref<8x4xf32, #tpu.memory_space<smem>>
    %290 = vector.broadcast %289 : f32 to vector<2x128xf32>
    %291 = arith.mulf %288, %290 : vector<2x128xf32>
    %c0_228 = arith.constant 0 : index
    %c1_229 = arith.constant 1 : index
    %c0_230 = arith.constant 0 : index
    %c0_231 = arith.constant 0 : index
    %292 = vector.load %arg2[%c0_228, %c1_229, %c0_230, %c0_231] : memref<1x4x2x128xf32, #tpu.memory_space<vmem>>, vector<1x1x2x128xf32>
    %293 = vector.shape_cast %292 : vector<1x1x2x128xf32> to vector<2x128xf32>
    %c7_232 = arith.constant 7 : index
    %c1_233 = arith.constant 1 : index
    %294 = memref.load %arg3[%c7_232, %c1_233] : memref<8x4xf32, #tpu.memory_space<smem>>
    %295 = vector.broadcast %294 : f32 to vector<2x128xf32>
    %296 = arith.mulf %293, %295 : vector<2x128xf32>
    %297 = arith.addf %291, %296 : vector<2x128xf32>
    %c0_234 = arith.constant 0 : index
    %c2_235 = arith.constant 2 : index
    %c0_236 = arith.constant 0 : index
    %c0_237 = arith.constant 0 : index
    %298 = vector.load %arg2[%c0_234, %c2_235, %c0_236, %c0_237] : memref<1x4x2x128xf32, #tpu.memory_space<vmem>>, vector<1x1x2x128xf32>
    %299 = vector.shape_cast %298 : vector<1x1x2x128xf32> to vector<2x128xf32>
    %c7_238 = arith.constant 7 : index
    %c2_239 = arith.constant 2 : index
    %300 = memref.load %arg3[%c7_238, %c2_239] : memref<8x4xf32, #tpu.memory_space<smem>>
    %301 = vector.broadcast %300 : f32 to vector<2x128xf32>
    %302 = arith.mulf %299, %301 : vector<2x128xf32>
    %303 = arith.addf %297, %302 : vector<2x128xf32>
    %c0_240 = arith.constant 0 : index
    %c3_241 = arith.constant 3 : index
    %c0_242 = arith.constant 0 : index
    %c0_243 = arith.constant 0 : index
    %304 = vector.load %arg2[%c0_240, %c3_241, %c0_242, %c0_243] : memref<1x4x2x128xf32, #tpu.memory_space<vmem>>, vector<1x1x2x128xf32>
    %305 = vector.shape_cast %304 : vector<1x1x2x128xf32> to vector<2x128xf32>
    %c7_244 = arith.constant 7 : index
    %c3_245 = arith.constant 3 : index
    %306 = memref.load %arg3[%c7_244, %c3_245] : memref<8x4xf32, #tpu.memory_space<smem>>
    %307 = vector.broadcast %306 : f32 to vector<2x128xf32>
    %308 = arith.mulf %305, %307 : vector<2x128xf32>
    %309 = arith.addf %303, %308 : vector<2x128xf32>
    %c7_246 = arith.constant 7 : index
    %310 = memref.load %arg4[%c7_246] : memref<8xf32, #tpu.memory_space<smem>>
    %311 = vector.broadcast %310 : f32 to vector<2x128xf32>
    %312 = arith.addf %309, %311 : vector<2x128xf32>
    %cst_247 = arith.constant -3.000000e+01 : f32
    %313 = vector.broadcast %cst_247 : f32 to vector<2x128xf32>
    %314 = arith.maximumf %312, %313 : vector<2x128xf32>
    %cst_248 = arith.constant 0.000000e+00 : f32
    %315 = vector.broadcast %cst_248 : f32 to vector<2x128xf32>
    %316 = arith.subf %315, %314 : vector<2x128xf32>
    %317 = math.exp %316 : vector<2x128xf32>
    %cst_249 = arith.constant 1.000000e+00 : f32
    %318 = vector.broadcast %cst_249 : f32 to vector<2x128xf32>
    %319 = arith.addf %318, %317 : vector<2x128xf32>
    %320 = tpu.reciprocal %319 {approx = true} : vector<2x128xf32> -> vector<2x128xf32>
    %321 = arith.mulf %319, %320 : vector<2x128xf32>
    %cst_250 = arith.constant 2.000000e+00 : f32
    %322 = vector.broadcast %cst_250 : f32 to vector<2x128xf32>
    %323 = arith.subf %322, %321 : vector<2x128xf32>
    %324 = arith.mulf %320, %323 : vector<2x128xf32>
    %c0_251 = arith.constant 0 : index
    %c7_252 = arith.constant 7 : index
    %c0_253 = arith.constant 0 : index
    %c0_254 = arith.constant 0 : index
    %325 = vector.load %arg5[%c0_251, %c7_252, %c0_253, %c0_254] : memref<1x8x2x128xf32, #tpu.memory_space<vmem>>, vector<1x1x2x128xf32>
    %326 = vector.shape_cast %325 : vector<1x1x2x128xf32> to vector<2x128xf32>
    %327 = vector.shape_cast %324 : vector<2x128xf32> to vector<1x1x2x128xf32>
    tpu.vector_store %arg5[%c0_251, %c7_252, %c0_253, %c0_254], %327 {strides = array<i32>} : memref<1x8x2x128xf32, #tpu.memory_space<vmem>>, vector<1x1x2x128xf32>,
    return
  }
  func.func @transform_0(%arg0: i32, %arg1: i32) -> (i32, i32, i32, i32) {
    %c0_i32 = arith.constant 0 : i32
    %c0_i32_0 = arith.constant 0 : i32
    %c0_i32_1 = arith.constant 0 : i32
    return %arg0, %c0_i32, %arg1, %c0_i32_0 : i32, i32, i32, i32
  }
  func.func @transform_1(%arg0: i32, %arg1: i32) -> (i32, i32) {
    %c0_i32 = arith.constant 0 : i32
    %c0_i32_0 = arith.constant 0 : i32
    %c0_i32_1 = arith.constant 0 : i32
    return %c0_i32, %c0_i32_0 : i32, i32
  }
  func.func @transform_2(%arg0: i32, %arg1: i32) -> i32 {
    %c0_i32 = arith.constant 0 : i32
    %c0_i32_0 = arith.constant 0 : i32
    return %c0_i32 : i32
  }
  func.func @transform_3(%arg0: i32, %arg1: i32) -> (i32, i32, i32, i32) {
    %c0_i32 = arith.constant 0 : i32
    %c0_i32_0 = arith.constant 0 : i32
    %c0_i32_1 = arith.constant 0 : i32
    return %arg0, %c0_i32, %arg1, %c0_i32_0 : i32, i32, i32, i32
  }
}

</mosaic_0001>

<llo_original>
// kernel: tpu_custom_call.1
$region0: #{tpu_custom_call.1}
  #allocation0 [shape = 'u32[]', space=smem, size = 0x4, offset = 0x4, fixed_abs, tag = 'smem constant byte address 0x4 - core index']
  #allocation1 [shape = 'u32[144,128]{1,0:T(1,128)}', space=vmem, size = 0x12000, scoped, tag = 'internal scratch']
  %s0 = inlined_call_operand.hbm [shape: f32[2,4,2,128], index: 0, kind: input, shape index: {}]
  %s1 = inlined_call_operand.vmem [shape: f32[8,4], index: 1, kind: input, shape index: {}]
  %s2 = inlined_call_operand.vmem [shape: f32[8], index: 2, kind: input, shape index: {}]
  %s3 = inlined_call_operand.hbm [shape: f32[2,8,2,128], index: 3, kind: output, shape index: {}]
  %s4 = sld [smem:[#allocation0]]
  $region57: #{tpu_custom_call.1} parent=0
    _
  %s6 = ssub.s32 1, %s4
  %s7 = scalar_select 0, %s6, %s4
  $region1: #{tpu_custom_call.1} parent=0
    #allocation2 [shape = 'u8[8192]{0}', space=vmem, size = 0x2000, scoped, tag = 'input window, operand 0']
    #allocation3 [shape = 's32[2]{0}', space=sflag, size = 0x8, scoped, tag = 'scoped memory for tpu_custom_call.1']
    #allocation4 [shape = 's32[2]{0}', space=sflag, size = 0x8, scoped, tag = 'scoped memory for tpu_custom_call.1']
    #allocation5 [shape = 's32[2]{0}', space=sflag, size = 0x8, scoped, tag = 'scoped memory for tpu_custom_call.1']
    #allocation6 [shape = 'u8[4096]{0}', space=smem, size = 0x1000, scoped, tag = 'input window, operand 1, single buffered']
    #allocation7 [shape = 'u8[512]{0}', space=smem, size = 0x200, scoped, tag = 'input window, operand 2, single buffered']
    #allocation8 [shape = 's32[1]{0}', space=sflag, size = 0x4, scoped, tag = 'scoped memory for tpu_custom_call.1']
    #allocation9 [shape = 'u8[16384]{0}', space=vmem, size = 0x4000, scoped, tag = 'output window, operand 0']
    %8 = vsyncpa [#allocation3], 0
    %s9 = scalar_lea.sflag [#allocation3], 1
    %10 = vsyncpa %s9, 0
    %11 = vsyncpa [#allocation5], 0
    %12 = vsyncpa [#allocation8], 0
    %13 = vsyncpa [#allocation4], 0
    %s14 = scalar_lea.sflag [#allocation4], 1
    %15 = vsyncpa %s14, 0
    loop: start=0, step=1, limit=4
    $region2: #{tpu_custom_call.1} parent=1 // loop_pre_header
      _
    $region3: #{tpu_custom_call.1} parent=1 // loop_header
      %s17 = sphi 0, %s21
      %p18 = scmp.ge.s32.totalorder %s17, 4
      %s24 = sphi 0, %s36
      %s25 = sphi 0, %s32
      %s26 = sphi 0, %s24
      %s27 = sphi 0, %s25
      %s28 = sphi 0, %s26
      %s29 = sphi 0, %s27
      %s41 = sphi 0, %s43
      %s44 = sphi 0, %s41
      %s45 = sphi 0, %s44
      %s61 = sphi 0, %s45
      %s65 = sphi 0, %s65
      %s67 = sphi 0, %s65
      %s68 = sphi 0, %s67
      %s82 = sphi 0, %s68
      %s86 = sphi 0, %s86
      %s88 = sphi 0, %s86
      %s89 = sphi 0, %s88
      %s103 = sphi 0, %s89
      %s111 = sphi 0, %s113
      %s114 = sphi 0, %s111
      %s115 = sphi 0, %s114
      %s131 = sphi 0, %s115
    $region4: #{tpu_custom_call.1} parent=1 // loop_header_branch
      %20 = sbr.rel (%p18) target = $region8
    $region5: #{tpu_custom_call.1} parent=1 // loop_body
      %s22 = ssub.s32 %s17, 1
      %s23 = ssub.s32 %s17, 2
      %s30 = sadd.s32 1, %s25
      %p31 = scmp.ge.s32.totalorder %s30, 1
      %s32 = scalar_select %p31, 0, %s30
      %s33 = sadd.s32 1, %s24
      %s34 = scalar_select %p31, %s33, %s24
      %p35 = scmp.ge.s32.totalorder %s34, 2
      %s36 = scalar_select %p35, 0, %s34
      %s37 = ssub.s32 %s24, %s36
      %s38 = ssub.s32 %s25, %s32
      %s39 = sor.u32 %s37, %s38
      %p40 = scmp.eq.s32.totalorder %s39, 0
      %s42 = sadd.s32 %s41, 1
      %s43 = scalar_select %p40, %s41, %s42
      %p46 = pneg %p40
      %p47 = scmp.eq.s32.totalorder %s17, 1
      %p48 = por %p46, %p47
      %p49 = scmp.ne.s32.totalorder %s41, %s44
      %p50 = scmp.eq.s32.totalorder %s17, 0
      %p51 = por %p49, %p50
      %p52 = scmp.ne.s32.totalorder %s41, %s44
      %p53 = scmp.eq.s32.totalorder %s22, 1
      %p54 = por %p52, %p53
      %p55 = scmp.ne.s32.totalorder %s44, %s45
      %p56 = scmp.eq.s32.totalorder %s22, 0
      %p57 = por %p55, %p56
      %p58 = scmp.ne.s32.totalorder %s44, %s45
      %p59 = scmp.eq.s32.totalorder %s23, 1
      %p60 = por %p58, %p59
      %p62 = scmp.ne.s32.totalorder %s45, %s61
      %p63 = scmp.eq.s32.totalorder %s23, 0
      %p64 = por %p62, %p63
      %s66 = sadd.s32 %s65, 1
      %p69 = scmp.eq.s32.totalorder %s17, 1
      %p70 = scmp.ne.s32.totalorder %s65, %s67
      %p71 = scmp.eq.s32.totalorder %s17, 0
      %p72 = por %p70, %p71
      %p73 = scmp.ne.s32.totalorder %s65, %s67
      %p74 = scmp.eq.s32.totalorder %s22, 1
      %p75 = por %p73, %p74
      %p76 = scmp.ne.s32.totalorder %s67, %s68
      %p77 = scmp.eq.s32.totalorder %s22, 0
      %p78 = por %p76, %p77
      %p79 = scmp.ne.s32.totalorder %s67, %s68
      %p80 = scmp.eq.s32.totalorder %s23, 1
      %p81 = por %p79, %p80
      %p83 = scmp.ne.s32.totalorder %s68, %s82
      %p84 = scmp.eq.s32.totalorder %s23, 0
      %p85 = por %p83, %p84
      %s87 = sadd.s32 %s86, 1
      %p90 = scmp.eq.s32.totalorder %s17, 1
      %p91 = scmp.ne.s32.totalorder %s86, %s88
      %p92 = scmp.eq.s32.totalorder %s17, 0
      %p93 = por %p91, %p92
      %p94 = scmp.ne.s32.totalorder %s86, %s88
      %p95 = scmp.eq.s32.totalorder %s22, 1
      %p96 = por %p94, %p95
      %p97 = scmp.ne.s32.totalorder %s88, %s89
      %p98 = scmp.eq.s32.totalorder %s22, 0
      %p99 = por %p97, %p98
      %p100 = scmp.ne.s32.totalorder %s88, %s89
      %p101 = scmp.eq.s32.totalorder %s23, 1
      %p102 = por %p100, %p101
      %p104 = scmp.ne.s32.totalorder %s89, %s103
      %p105 = scmp.eq.s32.totalorder %s23, 0
      %p106 = por %p104, %p105
      %s107 = ssub.s32 %s24, %s36
      %s108 = ssub.s32 %s25, %s32
      %s109 = sor.u32 %s107, %s108
      %p110 = scmp.eq.s32.totalorder %s109, 0
      %s112 = sadd.s32 %s111, 1
      %s113 = scalar_select %p110, %s111, %s112
      %p116 = pneg %p110
      %p117 = scmp.eq.s32.totalorder %s17, 1
      %p118 = por %p116, %p117
      %p119 = scmp.ne.s32.totalorder %s111, %s114
      %p120 = scmp.eq.s32.totalorder %s17, 0
      %p121 = por %p119, %p120
      %p122 = scmp.ne.s32.totalorder %s111, %s114
      %p123 = scmp.eq.s32.totalorder %s22, 1
      %p124 = por %p122, %p123
      %p125 = scmp.ne.s32.totalorder %s114, %s115
      %p126 = scmp.eq.s32.totalorder %s22, 0
      %p127 = por %p125, %p126
      %p128 = scmp.ne.s32.totalorder %s114, %s115
      %p129 = scmp.eq.s32.totalorder %s23, 1
      %p130 = por %p128, %p129
      %p132 = scmp.ne.s32.totalorder %s115, %s131
      %p133 = scmp.eq.s32.totalorder %s23, 0
      %p134 = por %p132, %p133
      %p135 = scmp.le.s32.totalorder 1, %s17
      %p136 = scmp.lt.s32.totalorder %s17, 3
      %p137 = pnand %p135, %p136
      %p138 = pneg %p137
      // Predicated region
      $region9: #{tpu_custom_call.1} parent=5 // pred_check
        _
      $region10: #{tpu_custom_call.1} parent=5 // pred_check_branch
        %140 = sbr.rel (%p137) target = $region12
      $region11: #{tpu_custom_call.1} parent=5 // pred_region
        %s141 = ssub.s32 %s17, 1
        // Predicated region
        $region13: #{tpu_custom_call.1} parent=11 // pred_check
          %p142 = pneg %p78
        $region14: #{tpu_custom_call.1} parent=11 // pred_check_branch
          %144 = sbr.rel (%p142) target = $region16
        $region15: #{tpu_custom_call.1} parent=11 // pred_region
          %s146 = ssub.s32 128, 128
          %147 = vsyncadd [#allocation5], %s146
          %s149 = sshll.u32 %s1, 4
          %s150 = int_to_ptr.vmem [resolvable:$true] %s149
          %152 = dma.vmem_to_smem %s150, 128, [#allocation6], [#allocation5]
        $region16: #{tpu_custom_call.1} parent=11 // pred_fallthru
          _
        // Predicated region
        $region17: #{tpu_custom_call.1} parent=11 // pred_check
          %p153 = pneg %p99
        $region18: #{tpu_custom_call.1} parent=11 // pred_check_branch
          %155 = sbr.rel (%p153) target = $region20
        $region19: #{tpu_custom_call.1} parent=11 // pred_region
          %s157 = ssub.s32 16, 16
          %158 = vsyncadd [#allocation8], %s157
          %s160 = sshll.u32 %s2, 4
          %s161 = int_to_ptr.vmem [resolvable:$true] %s160
          %163 = dma.vmem_to_smem %s161, 16, [#allocation7], [#allocation8]
        $region20: #{tpu_custom_call.1} parent=11 // pred_fallthru
          _
      $region12: #{tpu_custom_call.1} parent=5 // pred_fallthru
        _
      %p164 = scmp.lt.s32.totalorder %s17, 2
      // Predicated region
      $region21: #{tpu_custom_call.1} parent=5 // pred_check
        %p165 = pneg %p164
      $region22: #{tpu_custom_call.1} parent=5 // pred_check_branch
        %167 = sbr.rel (%p165) target = $region24
      $region23: #{tpu_custom_call.1} parent=5 // pred_region
        // Predicated region
        $region25: #{tpu_custom_call.1} parent=23 // pred_check
          %p168 = pneg %p51
        $region26: #{tpu_custom_call.1} parent=23 // pred_check_branch
          %170 = sbr.rel (%p168) target = $region28
        $region27: #{tpu_custom_call.1} parent=23 // pred_region
          %s171 = sand.u32 %s41, 1
          %s172 = scalar_lea.sflag [#allocation3], %s171
          %s173 = sand.u32 %s41, 1
          %s174 = smul.addr %s173, 8
          %s175 = scalar_lea.vmem [#allocation2], %s174
          %s177 = ssub.s32 128, 128
          %178 = vsyncadd %s172, %s177
          %s179 = smul.addr %s24, 4
          %s180 = sadd.s32 %s25, %s179
          %s181 = smul.addr %s180, 32
          %s182 = scalar_lea.hbm %s0, %s181
          %s183 = sshll.u32 %s175, 4
          %s184 = int_to_ptr.vmem [resolvable:$true] %s183
          %189 = dma.hbm_to_vmem [thread:$0]  %s182, 128, %s184, %s172, 32, 32, 2
        $region28: #{tpu_custom_call.1} parent=23 // pred_fallthru
          _
      $region24: #{tpu_custom_call.1} parent=5 // pred_fallthru
        _
      %p190 = scmp.le.s32.totalorder 1, %s17
      %p191 = scmp.lt.s32.totalorder %s17, 3
      %p192 = pnand %p190, %p191
      %p193 = pneg %p192
      // Predicated region
      $region29: #{tpu_custom_call.1} parent=5 // pred_check
        _
      $region30: #{tpu_custom_call.1} parent=5 // pred_check_branch
        %195 = sbr.rel (%p192) target = $region32
      $region31: #{tpu_custom_call.1} parent=5 // pred_region
        %s196 = ssub.s32 %s17, 1
        %s197 = sand.u32 %s44, 1
        %s198 = scalar_lea.sflag [#allocation3], %s197
        %s199 = sand.u32 %s44, 1
        %s200 = smul.addr %s199, 8
        %s201 = scalar_lea.vmem [#allocation2], %s200
        // Predicated region
        $region33: #{tpu_custom_call.1} parent=31 // pred_check
          %p202 = pneg %p57
        $region34: #{tpu_custom_call.1} parent=31 // pred_check_branch
          %204 = sbr.rel (%p202) target = $region36
        $region35: #{tpu_custom_call.1} parent=31 // pred_region
          %205 = dma.done %s198, 128
        $region36: #{tpu_custom_call.1} parent=31 // pred_fallthru
          _
        // Predicated region
        $region37: #{tpu_custom_call.1} parent=31 // pred_check
          %p206 = pneg %p78
        $region38: #{tpu_custom_call.1} parent=31 // pred_check_branch
          %208 = sbr.rel (%p206) target = $region40
        $region39: #{tpu_custom_call.1} parent=31 // pred_region
          %209 = dma.done [#allocation5], 128
        $region40: #{tpu_custom_call.1} parent=31 // pred_fallthru
          _
        // Predicated region
        $region41: #{tpu_custom_call.1} parent=31 // pred_check
          %p210 = pneg %p99
        $region42: #{tpu_custom_call.1} parent=31 // pred_check_branch
          %212 = sbr.rel (%p210) target = $region44
        $region43: #{tpu_custom_call.1} parent=31 // pred_region
          %213 = dma.done [#allocation8], 16
        $region44: #{tpu_custom_call.1} parent=31 // pred_fallthru
          _
        %214 = sfence
        %s215 = sand.u32 %s44, 1
        %s216 = scalar_lea.sflag [#allocation3], %s215
        %s217 = sand.u32 %s44, 1
        %s218 = smul.addr %s217, 8
        %s219 = scalar_lea.vmem [#allocation2], %s218
        %p220 = pneg %p57
        %p221 = pneg %p54
        %p222 = pneg %p78
        %p223 = pneg %p75
        %p224 = pneg %p99
        %p225 = pneg %p96
        %p226 = pneg %p127
        %p227 = pneg %p124
        %s228 = sand.u32 %s114, 1
        %s229 = scalar_lea.sflag [#allocation4], %s228
        %s230 = sand.u32 %s114, 1
        %s231 = smul.addr %s230, 16
        %s232 = scalar_lea.vmem [#allocation9], %s231
        %v233 = vld [vmem:[%s201] sm:$0x3]
        %s234 = sld [smem:[#allocation6]]
        %v235 = vstv %s234
        %v236 = vmul.f32 %v233, %v235
        %s237 = scalar_lea.vmem %s201, 2 [#allocation2]
        %v238 = vld [vmem:[%s237] sm:$0x3]
        %s239 = sld [smem:[#allocation6 + $0x1]]
        %v240 = vstv %s239
        %v241 = vmul.f32 %v238, %v240
        %v242 = vadd.f32 %v236, %v241
        %s243 = scalar_lea.vmem %s201, 4 [#allocation2]
        %v244 = vld [vmem:[%s243] sm:$0x3]
        %s245 = sld [smem:[#allocation6 + $0x2]]
        %v246 = vstv %s245
        %v247 = vmul.f32 %v244, %v246
        %v248 = vadd.f32 %v242, %v247
        %s249 = scalar_lea.vmem %s201, 6 [#allocation2]
        %v250 = vld [vmem:[%s249] sm:$0x3]
        %s251 = sld [smem:[#allocation6 + $0x3]]
        %v252 = vstv %s251
        %v253 = vmul.f32 %v250, %v252
        %v254 = vadd.f32 %v248, %v253
        %s255 = sld [smem:[#allocation7]]
        %v256 = vstv %s255
        %v257 = vadd.f32 %v254, %v256
        %v258 = vmax.f32 %v257, -30.0
        %v259 = vsub.f32 0.0, %v258
        %v260 = vmul.f32 %v259, 1.442695
        %v261 = vpow.pop %v260
        %v262 = vadd.f32 %v261, 1.0
        %v263 = vrcp.pop %v262
        %v264 = vmul.f32 %v262, %v263
        %v265 = vsub.f32 2.0, %v264
        %v266 = vmul.f32 %v263, %v265
        %267 = vst [vmem:[%s232] sm:$0x3] %v266
        %v268 = vld [vmem:[%s201] sm:$0x3]
        %s269 = sld [smem:[#allocation6 + $0x80]]
        %v270 = vstv %s269
        %v271 = vmul.f32 %v268, %v270
        %v272 = vld [vmem:[%s237] sm:$0x3]
        %s273 = sld [smem:[#allocation6 + $0x81]]
        %v274 = vstv %s273
        %v275 = vmul.f32 %v272, %v274
        %v276 = vadd.f32 %v271, %v275
        %v277 = vld [vmem:[%s243] sm:$0x3]
        %s278 = sld [smem:[#allocation6 + $0x82]]
        %v279 = vstv %s278
        %v280 = vmul.f32 %v277, %v279
        %v281 = vadd.f32 %v276, %v280
        %v282 = vld [vmem:[%s249] sm:$0x3]
        %s283 = sld [smem:[#allocation6 + $0x83]]
        %v284 = vstv %s283
        %v285 = vmul.f32 %v282, %v284
        %v286 = vadd.f32 %v281, %v285
        %s287 = sld [smem:[#allocation7 + $0x1]]
        %v288 = vstv %s287
        %v289 = vadd.f32 %v286, %v288
        %v290 = vmax.f32 %v289, -30.0
        %v291 = vsub.f32 0.0, %v290
        %v292 = vmul.f32 %v291, 1.442695
        %v293 = vpow.pop %v292
        %v294 = vadd.f32 %v293, 1.0
        %v295 = vrcp.pop %v294
        %v296 = vmul.f32 %v294, %v295
        %v297 = vsub.f32 2.0, %v296
        %v298 = vmul.f32 %v295, %v297
        %s299 = scalar_lea.vmem %s232, 2 [#allocation9]
        %300 = vst [vmem:[%s299] sm:$0x3] %v298
        %v301 = vld [vmem:[%s201] sm:$0x3]
        %s302 = sld [smem:[#allocation6 + $0x100]]
        %v303 = vstv %s302
        %v304 = vmul.f32 %v301, %v303
        %v305 = vld [vmem:[%s237] sm:$0x3]
        %s306 = sld [smem:[#allocation6 + $0x101]]
        %v307 = vstv %s306
        %v308 = vmul.f32 %v305, %v307
        %v309 = vadd.f32 %v304, %v308
        %v310 = vld [vmem:[%s243] sm:$0x3]
        %s311 = sld [smem:[#allocation6 + $0x102]]
        %v312 = vstv %s311
        %v313 = vmul.f32 %v310, %v312
        %v314 = vadd.f32 %v309, %v313
        %v315 = vld [vmem:[%s249] sm:$0x3]
        %s316 = sld [smem:[#allocation6 + $0x103]]
        %v317 = vstv %s316
        %v318 = vmul.f32 %v315, %v317
        %v319 = vadd.f32 %v314, %v318
        %s320 = sld [smem:[#allocation7 + $0x2]]
        %v321 = vstv %s320
        %v322 = vadd.f32 %v319, %v321
        %v323 = vmax.f32 %v322, -30.0
        %v324 = vsub.f32 0.0, %v323
        %v325 = vmul.f32 %v324, 1.442695
        %v326 = vpow.pop %v325
        %v327 = vadd.f32 %v326, 1.0
        %v328 = vrcp.pop %v327
        %v329 = vmul.f32 %v327, %v328
        %v330 = vsub.f32 2.0, %v329
        %v331 = vmul.f32 %v328, %v330
        %s332 = scalar_lea.vmem %s232, 4 [#allocation9]
        %333 = vst [vmem:[%s332] sm:$0x3] %v331
        %v334 = vld [vmem:[%s201] sm:$0x3]
        %s335 = sld [smem:[#allocation6 + $0x180]]
        %v336 = vstv %s335
        %v337 = vmul.f32 %v334, %v336
        %v338 = vld [vmem:[%s237] sm:$0x3]
        %s339 = sld [smem:[#allocation6 + $0x181]]
        %v340 = vstv %s339
        %v341 = vmul.f32 %v338, %v340
        %v342 = vadd.f32 %v337, %v341
        %v343 = vld [vmem:[%s243] sm:$0x3]
        %s344 = sld [smem:[#allocation6 + $0x182]]
        %v345 = vstv %s344
        %v346 = vmul.f32 %v343, %v345
        %v347 = vadd.f32 %v342, %v346
        %v348 = vld [vmem:[%s249] sm:$0x3]
        %s349 = sld [smem:[#allocation6 + $0x183]]
        %v350 = vstv %s349
        %v351 = vmul.f32 %v348, %v350
        %v352 = vadd.f32 %v347, %v351
        %s353 = sld [smem:[#allocation7 + $0x3]]
        %v354 = vstv %s353
        %v355 = vadd.f32 %v352, %v354
        %v356 = vmax.f32 %v355, -30.0
        %v357 = vsub.f32 0.0, %v356
        %v358 = vmul.f32 %v357, 1.442695
        %v359 = vpow.pop %v358
        %v360 = vadd.f32 %v359, 1.0
        %v361 = vrcp.pop %v360
        %v362 = vmul.f32 %v360, %v361
        %v363 = vsub.f32 2.0, %v362
        %v364 = vmul.f32 %v361, %v363
        %s365 = scalar_lea.vmem %s232, 6 [#allocation9]
        %366 = vst [vmem:[%s365] sm:$0x3] %v364
        %v367 = vld [vmem:[%s201] sm:$0x3]
        %s368 = sld [smem:[#allocation6 + $0x200]]
        %v369 = vstv %s368
        %v370 = vmul.f32 %v367, %v369
        %v371 = vld [vmem:[%s237] sm:$0x3]
        %s372 = sld [smem:[#allocation6 + $0x201]]
        %v373 = vstv %s372
        %v374 = vmul.f32 %v371, %v373
        %v375 = vadd.f32 %v370, %v374
        %v376 = vld [vmem:[%s243] sm:$0x3]
        %s377 = sld [smem:[#allocation6 + $0x202]]
        %v378 = vstv %s377
        %v379 = vmul.f32 %v376, %v378
        %v380 = vadd.f32 %v375, %v379
        %v381 = vld [vmem:[%s249] sm:$0x3]
        %s382 = sld [smem:[#allocation6 + $0x203]]
        %v383 = vstv %s382
        %v384 = vmul.f32 %v381, %v383
        %v385 = vadd.f32 %v380, %v384
        %s386 = sld [smem:[#allocation7 + $0x4]]
        %v387 = vstv %s386
        %v388 = vadd.f32 %v385, %v387
        %v389 = vmax.f32 %v388, -30.0
        %v390 = vsub.f32 0.0, %v389
        %v391 = vmul.f32 %v390, 1.442695
        %v392 = vpow.pop %v391
        %v393 = vadd.f32 %v392, 1.0
        %v394 = vrcp.pop %v393
        %v395 = vmul.f32 %v393, %v394
        %v396 = vsub.f32 2.0, %v395
        %v397 = vmul.f32 %v394, %v396
        %s398 = scalar_lea.vmem %s232, 8 [#allocation9]
        %399 = vst [vmem:[%s398] sm:$0x3] %v397
        %v400 = vld [vmem:[%s201] sm:$0x3]
        %s401 = sld [smem:[#allocation6 + $0x280]]
        %v402 = vstv %s401
        %v403 = vmul.f32 %v400, %v402
        %v404 = vld [vmem:[%s237] sm:$0x3]
        %s405 = sld [smem:[#allocation6 + $0x281]]
        %v406 = vstv %s405
        %v407 = vmul.f32 %v404, %v406
        %v408 = vadd.f32 %v403, %v407
        %v409 = vld [vmem:[%s243] sm:$0x3]
        %s410 = sld [smem:[#allocation6 + $0x282]]
        %v411 = vstv %s410
        %v412 = vmul.f32 %v409, %v411
        %v413 = vadd.f32 %v408, %v412
        %v414 = vld [vmem:[%s249] sm:$0x3]
        %s415 = sld [smem:[#allocation6 + $0x283]]
        %v416 = vstv %s415
        %v417 = vmul.f32 %v414, %v416
        %v418 = vadd.f32 %v413, %v417
        %s419 = sld [smem:[#allocation7 + $0x5]]
        %v420 = vstv %s419
        %v421 = vadd.f32 %v418, %v420
        %v422 = vmax.f32 %v421, -30.0
        %v423 = vsub.f32 0.0, %v422
        %v424 = vmul.f32 %v423, 1.442695
        %v425 = vpow.pop %v424
        %v426 = vadd.f32 %v425, 1.0
        %v427 = vrcp.pop %v426
        %v428 = vmul.f32 %v426, %v427
        %v429 = vsub.f32 2.0, %v428
        %v430 = vmul.f32 %v427, %v429
        %s431 = scalar_lea.vmem %s232, 10 [#allocation9]
        %432 = vst [vmem:[%s431] sm:$0x3] %v430
        %v433 = vld [vmem:[%s201] sm:$0x3]
        %s434 = sld [smem:[#allocation6 + $0x300]]
        %v435 = vstv %s434
        %v436 = vmul.f32 %v433, %v435
        %v437 = vld [vmem:[%s237] sm:$0x3]
        %s438 = sld [smem:[#allocation6 + $0x301]]
        %v439 = vstv %s438
        %v440 = vmul.f32 %v437, %v439
        %v441 = vadd.f32 %v436, %v440
        %v442 = vld [vmem:[%s243] sm:$0x3]
        %s443 = sld [smem:[#allocation6 + $0x302]]
        %v444 = vstv %s443
        %v445 = vmul.f32 %v442, %v444
        %v446 = vadd.f32 %v441, %v445
        %v447 = vld [vmem:[%s249] sm:$0x3]
        %s448 = sld [smem:[#allocation6 + $0x303]]
        %v449 = vstv %s448
        %v450 = vmul.f32 %v447, %v449
        %v451 = vadd.f32 %v446, %v450
        %s452 = sld [smem:[#allocation7 + $0x6]]
        %v453 = vstv %s452
        %v454 = vadd.f32 %v451, %v453
        %v455 = vmax.f32 %v454, -30.0
        %v456 = vsub.f32 0.0, %v455
        %v457 = vmul.f32 %v456, 1.442695
        %v458 = vpow.pop %v457
        %v459 = vadd.f32 %v458, 1.0
        %v460 = vrcp.pop %v459
        %v461 = vmul.f32 %v459, %v460
        %v462 = vsub.f32 2.0, %v461
        %v463 = vmul.f32 %v460, %v462
        %s464 = scalar_lea.vmem %s232, 12 [#allocation9]
        %465 = vst [vmem:[%s464] sm:$0x3] %v463
        %v466 = vld [vmem:[%s201] sm:$0x3]
        %s467 = sld [smem:[#allocation6 + $0x380]]
        %v468 = vstv %s467
        %v469 = vmul.f32 %v466, %v468
        %v470 = vld [vmem:[%s237] sm:$0x3]
        %s471 = sld [smem:[#allocation6 + $0x381]]
        %v472 = vstv %s471
        %v473 = vmul.f32 %v470, %v472
        %v474 = vadd.f32 %v469, %v473
        %v475 = vld [vmem:[%s243] sm:$0x3]
        %s476 = sld [smem:[#allocation6 + $0x382]]
        %v477 = vstv %s476
        %v478 = vmul.f32 %v475, %v477
        %v479 = vadd.f32 %v474, %v478
        %v480 = vld [vmem:[%s249] sm:$0x3]
        %s481 = sld [smem:[#allocation6 + $0x383]]
        %v482 = vstv %s481
        %v483 = vmul.f32 %v480, %v482
        %v484 = vadd.f32 %v479, %v483
        %s485 = sld [smem:[#allocation7 + $0x7]]
        %v486 = vstv %s485
        %v487 = vadd.f32 %v484, %v486
        %v488 = vmax.f32 %v487, -30.0
        %v489 = vsub.f32 0.0, %v488
        %v490 = vmul.f32 %v489, 1.442695
        %v491 = vpow.pop %v490
        %v492 = vadd.f32 %v491, 1.0
        %v493 = vrcp.pop %v492
        %v494 = vmul.f32 %v492, %v493
        %v495 = vsub.f32 2.0, %v494
        %v496 = vmul.f32 %v493, %v495
        %s497 = scalar_lea.vmem %s232, 14 [#allocation9]
        %498 = vst [vmem:[%s497] sm:$0x3] %v496
        %s499 = sand.u32 %s114, 1
        %s500 = scalar_lea.sflag [#allocation4], %s499
        %s501 = sand.u32 %s114, 1
        %s502 = smul.addr %s501, 16
        %s503 = scalar_lea.vmem [#allocation9], %s502
        // Predicated region
        $region45: #{tpu_custom_call.1} parent=31 // pred_check
          %p504 = pneg %p124
        $region46: #{tpu_custom_call.1} parent=31 // pred_check_branch
          %506 = sbr.rel (%p504) target = $region48
        $region47: #{tpu_custom_call.1} parent=31 // pred_region
          %s508 = ssub.s32 256, 256
          %509 = vsyncadd %s500, %s508
          %s510 = smul.addr %s26, 8
          %s511 = sadd.s32 %s27, %s510
          %s512 = smul.addr %s511, 32
          %s513 = scalar_lea.hbm %s3, %s512
          %s514 = sshll.u32 %s503, 4
          %s515 = int_to_ptr.vmem [resolvable:$true] %s514
          %520 = dma.vmem_to_hbm [thread:$0]  %s515, 256, %s513, %s500, 32, 32, 2
        $region48: #{tpu_custom_call.1} parent=31 // pred_fallthru
          _
      $region32: #{tpu_custom_call.1} parent=5 // pred_fallthru
        _
      %p521 = scmp.le.s32.totalorder 2, %s17
      // Predicated region
      $region49: #{tpu_custom_call.1} parent=5 // pred_check
        %p522 = pneg %p521
      $region50: #{tpu_custom_call.1} parent=5 // pred_check_branch
        %524 = sbr.rel (%p522) target = $region52
      $region51: #{tpu_custom_call.1} parent=5 // pred_region
        %s525 = ssub.s32 %s17, 2
        // Predicated region
        $region53: #{tpu_custom_call.1} parent=51 // pred_check
          %p526 = pneg %p130
        $region54: #{tpu_custom_call.1} parent=51 // pred_check_branch
          %528 = sbr.rel (%p526) target = $region56
        $region55: #{tpu_custom_call.1} parent=51 // pred_region
          %s529 = sand.u32 %s115, 1
          %s530 = scalar_lea.sflag [#allocation4], %s529
          %s531 = sand.u32 %s115, 1
          %s532 = smul.addr %s531, 16
          %s533 = scalar_lea.vmem [#allocation9], %s532
          %534 = dma.done %s530, 256
        $region56: #{tpu_custom_call.1} parent=51 // pred_fallthru
          _
      $region52: #{tpu_custom_call.1} parent=5 // pred_fallthru
        _
    $region6: #{tpu_custom_call.1} parent=1 // loop_footer
      %s21 = sadd.s32 1, %s17
    $region7: #{tpu_custom_call.1} parent=1 // loop_footer_branch
      %16 = sbr.rel target = $region3
    $region8: #{tpu_custom_call.1} parent=1 // loop_exit
      _
    %535 = vsyncpa [#allocation3], 1
    %s536 = scalar_lea.sflag [#allocation3], 1
    %537 = vsyncpa %s536, 1
    %538 = vsyncpa [#allocation4], 1
    %s539 = scalar_lea.sflag [#allocation4], 1
    %540 = vsyncpa %s539, 1
    %541 = vsyncpa [#allocation5], 1
    %s542 = scalar_lea.sflag [#allocation5], 1
    %543 = vsyncpa %s542, 1
    %544 = vsyncpa [#allocation8], 1

</llo_original>
